<compile_context>
chip_gen: v6e
topology: v6e:2x2x1
jax: 0.10.0
libtpu: 0.0.40
codegen_flags: <defaults>
</compile_context>

<pallas_src>
from functools import partial

import jax
import jax.numpy as jnp
from jax import lax
from jax.experimental import pallas as pl
from jax.experimental.pallas import tpu as pltpu


_LANES = 512          # lane-dense slab width (multiple of 128)
_MAX_TILE_ROWS = 512  # 512 x 512 x 4 B = 1 MiB per f32 block (x2 for double buffer)


def _round_up(x, m):
    return ((x + m - 1) // m) * m


def _cdiv(a, b):
    return -(-a // b)


def _is_zero_loss(losses):
    # Mirrors BaseReducer.input_is_zero_loss: "not a tensor and == 0".
    if isinstance(losses, jax.Array):
        return False
    shp = getattr(losses, "shape", None)
    if shp not in (None, ()):
        return False
    try:
        return bool(losses == 0)
    except Exception:
        return False


def _weighted_sum_kernel(x_ref, out_ref, acc_ref, *, segments, lanes, tile_rows):
    """out = sum_i scale_i * sum(losses[segment_i]), tiled over slab rows.

    `segments` is a static tuple of (flat_offset, length, scale).
    """
    k = pl.program_id(0)

    @pl.when(k == 0)
    def _():
        out_ref[...] = jnp.zeros_like(out_ref)
        acc_ref[...] = jnp.zeros_like(acc_ref)

    x = x_ref[...].astype(jnp.float32)  # f32 accumulation even for bf16 slabs

    # Global flat index of every element of this tile (static segment bounds).
    row = lax.broadcasted_iota(jnp.int32, x.shape, 0) + k * tile_rows
    col = lax.broadcasted_iota(jnp.int32, x.shape, 1)
    flat = row * lanes + col

    w = jnp.zeros(x.shape, jnp.float32)
    for off, n, scale in segments:
        w = jnp.where((flat >= off) & (flat < off + n), jnp.float32(scale), w)

    # Sublane-only reduce per tile (vreg adds on the VALU), accumulate into the
    # lane-dense (1, lanes) scratch.  Cross-lane (XLU) reduce happens once, at
    # the final step.
    acc_ref[...] += jnp.sum(x * w, axis=0, keepdims=True)

    @pl.when(k == pl.num_programs(0) - 1)
    def _():
        out_ref[...] = jnp.sum(acc_ref[...], axis=1, keepdims=True)


def _pallas_weighted_sum(flat_losses, segments):
    total = int(flat_losses.shape[0])
    rows = max(_cdiv(total, _LANES), 1)
    tile_rows = min(_round_up(rows, 8), _MAX_TILE_ROWS)
    rows_padded = _round_up(rows, tile_rows)
    padded_total = rows_padded * _LANES

    if padded_total != total:
        flat_losses = jnp.pad(flat_losses, (0, padded_total - total))
    slab = flat_losses.reshape(rows_padded, _LANES)

    grid = (rows_padded // tile_rows,)
    elt_bytes = jnp.dtype(slab.dtype).itemsize

    kernel = partial(
        _weighted_sum_kernel,
        segments=tuple(segments),
        lanes=_LANES,
        tile_rows=tile_rows,
    )

    out = pl.pallas_call(
        kernel,
        out_shape=jax.ShapeDtypeStruct((1, 1), jnp.float32),
        grid_spec=pltpu.PrefetchScalarGridSpec(
            num_scalar_prefetch=0,
            grid=grid,
            in_specs=[pl.BlockSpec((tile_rows, _LANES), lambda k: (k, 0))],
            out_specs=pl.BlockSpec((1, 1), lambda k: (0, 0)),
            scratch_shapes=[pltpu.VMEM((1, _LANES), jnp.float32)],
        ),
        compiler_params=pltpu.CompilerParams(
            dimension_semantics=("arbitrary",),  # reduction axis, output resident
        ),
        cost_estimate=pl.CostEstimate(
            flops=2 * padded_total,
            transcendentals=0,
            bytes_accessed=padded_total * elt_bytes + 4,
        ),
    )(slab)
    return out[0, 0]


def multiple_reducers_forward(loss_dict, embeddings, labels=None, reducers=None):
    """JAX/Pallas equivalent of MultipleReducers.forward.

    loss_dict: {name: {'losses': array | 0, 'indices': ..., 'reduction_type': str}}
    reducers:  names with a registered reducer; both registered and default
               reducers are MeanReducer-semantics here, so the math is identical.
    """
    del labels, reducers
    out_dtype = embeddings.dtype

    parts = []     # loss vectors to densely pack
    segments = []  # static (flat_offset, length, scale)
    offset = 0
    for _, loss_info in loss_dict.items():
        losses = loss_info["losses"]
        reduction_type = loss_info["reduction_type"]
        if _is_zero_loss(losses):
            # zero_loss path: sum(embeddings * 0) == 0 contribution.
            continue
        lv = jnp.asarray(losses).reshape(-1)
        n = int(lv.shape[0])
        if reduction_type == "already_reduced":
            assert n == 1, "already_reduced losses must be a scalar"
            scale = 1.0
        else:
            # element / pos_pair / neg_pair / triplet -> mean
            scale = 1.0 / n
        parts.append(lv)
        segments.append((offset, n, scale))
        offset += n

    if not parts:
        # Every loss took the zero-loss path.
        return jnp.zeros((), out_dtype)

    # Promote to a single packing dtype (keeps bf16 slabs bf16; mixes go to f32).
    common = parts[0].dtype if len(parts) == 1 else jnp.result_type(*parts)
    parts = [p if p.dtype == common else p.astype(common) for p in parts]

    flat = parts[0] if len(parts) == 1 else jnp.concatenate(parts)
    result = _pallas_weighted_sum(flat, segments)
    return result.astype(out_dtype)


if __name__ == "__main__":
    key = jax.random.PRNGKey(0)
    k1, k2, k3, k4, k5, k6 = jax.random.split(key, 6)

    batch, dim = 8, 32
    embeddings = jax.random.normal(k1, (batch, dim), dtype=jnp.float32)
    labels = jax.random.randint(k2, (batch,), 0, 4)

    losses_a = jax.random.uniform(k3, (10,), dtype=jnp.float32)   # element losses
    losses_b = jax.random.uniform(k4, (6,), dtype=jnp.float32)    # pos-pair losses
    losses_c = jax.random.uniform(k5, (1,), dtype=jnp.float32)    # already reduced

    loss_dict = {
        "loss_a": {"losses": losses_a, "indices": jnp.arange(10), "reduction_type": "element"},
        "loss_b": {"losses": losses_b, "indices": None, "reduction_type": "pos_pair"},
        "loss_c": {"losses": losses_c, "indices": None, "reduction_type": "already_reduced"},
        "loss_d": {"losses": 0, "indices": None, "reduction_type": "element"},  # zero-loss path
    }

    out = multiple_reducers_forward(loss_dict, embeddings, labels)
    out = jax.block_until_ready(out)
    ref = jnp.mean(losses_a) + jnp.mean(losses_b) + losses_c[0]
    assert jnp.allclose(out, ref, rtol=1e-5, atol=1e-6), (out, ref)

    # Larger case: exercises multi-tile accumulation (grid > 1) on the row axis.
    losses_big = jax.random.uniform(k6, (300_000,), dtype=jnp.float32)  # "triplet" losses
    loss_dict2 = {
        "triplet": {"losses": losses_big, "indices": None, "reduction_type": "triplet"},
        "pair": {"losses": losses_b, "indices": None, "reduction_type": "neg_pair"},
    }
    out2 = multiple_reducers_forward(loss_dict2, embeddings, labels)
    out2 = jax.block_until_ready(out2)
    ref2 = jnp.mean(losses_big) + jnp.mean(losses_b)
    assert jnp.allclose(out2, ref2, rtol=1e-5, atol=1e-6), (out2, ref2)

    print("KERNEL_OK")
</pallas_src>

<mosaic_0001>
module attributes {stable_mosaic.version = 11 : i64} {
  func.func @_weighted_sum_kernel(%arg0: i32, %arg1: memref<8x512xf32, #tpu.memory_space<vmem>>, %arg2: memref<1x1xf32, #tpu.memory_space<vmem>>, %arg3: memref<1x512xf32, #tpu.memory_space<vmem>>) attributes {dimension_semantics = [#tpu.dimension_semantics<arbitrary>], iteration_bounds = array<i64: 1>, scalar_prefetch = 0 : i64, scratch_operands = 1 : i64, tpu.core_type = #tpu.core_type<tc>, window_params = [{transform_indices = @transform_0, window_bounds = array<i64: 8, 512>}, {pipeline_mode = #tpu.pipeline_mode<synchronous>, transform_indices = @transform_1, window_bounds = array<i64: 1, 1>}]} {
    %c0_i32 = arith.constant 0 : i32
    %0 = arith.cmpi eq, %arg0, %c0_i32 : i32
    %1 = arith.extui %0 : i1 to i32
    %c0_i32_0 = arith.constant 0 : i32
    %2 = arith.cmpi ne, %1, %c0_i32_0 : i32
    scf.if %2 {
      %cst_15 = arith.constant 0.000000e+00 : f32
      %43 = vector.broadcast %cst_15 : f32 to vector<1x1xf32>
      %c0_16 = arith.constant 0 : index
      %c0_17 = arith.constant 0 : index
      %44 = vector.load %arg2[%c0_16, %c0_17] : memref<1x1xf32, #tpu.memory_space<vmem>>, vector<1x1xf32>
      tpu.vector_store %arg2[%c0_16, %c0_17], %43 {strides = array<i32>} : memref<1x1xf32, #tpu.memory_space<vmem>>, vector<1x1xf32>,
      %cst_18 = arith.constant 0.000000e+00 : f32
      %45 = vector.broadcast %cst_18 : f32 to vector<1x512xf32>
      %c0_19 = arith.constant 0 : index
      %c0_20 = arith.constant 0 : index
      %46 = vector.load %arg3[%c0_19, %c0_20] : memref<1x512xf32, #tpu.memory_space<vmem>>, vector<1x512xf32>
      tpu.vector_store %arg3[%c0_19, %c0_20], %45 {strides = array<i32>} : memref<1x512xf32, #tpu.memory_space<vmem>>, vector<1x512xf32>,
    } else {
    }
    %c0 = arith.constant 0 : index
    %c0_1 = arith.constant 0 : index
    %3 = vector.load %arg1[%c0, %c0_1] : memref<8x512xf32, #tpu.memory_space<vmem>>, vector<8x512xf32>
    %4 = tpu.iota {dimensions = array<i32: 0>} : vector<8x512xi32>
    %c8_i32 = arith.constant 8 : i32
    %5 = arith.muli %arg0, %c8_i32 : i32
    %6 = vector.broadcast %5 : i32 to vector<8x512xi32>
    %7 = arith.addi %4, %6 : vector<8x512xi32>
    %8 = tpu.iota {dimensions = array<i32: 1>} : vector<8x512xi32>
    %c512_i32 = arith.constant 512 : i32
    %9 = vector.broadcast %c512_i32 : i32 to vector<8x512xi32>
    %10 = arith.muli %7, %9 : vector<8x512xi32>
    %11 = arith.addi %10, %8 : vector<8x512xi32>
    %cst = arith.constant 0.000000e+00 : f32
    %12 = vector.broadcast %cst : f32 to vector<8x512xf32>
    %c0_i32_2 = arith.constant 0 : i32
    %13 = vector.broadcast %c0_i32_2 : i32 to vector<8x512xi32>
    %14 = arith.cmpi sge, %11, %13 : vector<8x512xi32>
    %c10_i32 = arith.constant 10 : i32
    %15 = vector.broadcast %c10_i32 : i32 to vector<8x512xi32>
    %16 = arith.cmpi slt, %11, %15 : vector<8x512xi32>
    %17 = arith.andi %14, %16 : vector<8x512xi1>
    %cst_3 = arith.constant 1.000000e-01 : f32
    %18 = vector.broadcast %cst_3 : f32 to vector<8x512xf32>
    %19 = arith.select %17, %18, %12 : vector<8x512xi1>, vector<8x512xf32>
    %c10_i32_4 = arith.constant 10 : i32
    %20 = vector.broadcast %c10_i32_4 : i32 to vector<8x512xi32>
    %21 = arith.cmpi sge, %11, %20 : vector<8x512xi32>
    %c16_i32 = arith.constant 16 : i32
    %22 = vector.broadcast %c16_i32 : i32 to vector<8x512xi32>
    %23 = arith.cmpi slt, %11, %22 : vector<8x512xi32>
    %24 = arith.andi %21, %23 : vector<8x512xi1>
    %cst_5 = arith.constant 0.166666672 : f32
    %25 = vector.broadcast %cst_5 : f32 to vector<8x512xf32>
    %26 = arith.select %24, %25, %19 : vector<8x512xi1>, vector<8x512xf32>
    %c16_i32_6 = arith.constant 16 : i32
    %27 = vector.broadcast %c16_i32_6 : i32 to vector<8x512xi32>
    %28 = arith.cmpi sge, %11, %27 : vector<8x512xi32>
    %c17_i32 = arith.constant 17 : i32
    %29 = vector.broadcast %c17_i32 : i32 to vector<8x512xi32>
    %30 = arith.cmpi slt, %11, %29 : vector<8x512xi32>
    %31 = arith.andi %28, %30 : vector<8x512xi1>
    %cst_7 = arith.constant 1.000000e+00 : f32
    %32 = vector.broadcast %cst_7 : f32 to vector<8x512xf32>
    %33 = arith.select %31, %32, %26 : vector<8x512xi1>, vector<8x512xf32>
    %c0_8 = arith.constant 0 : index
    %c0_9 = arith.constant 0 : index
    %34 = vector.load %arg3[%c0_8, %c0_9] : memref<1x512xf32, #tpu.memory_space<vmem>>, vector<1x512xf32>
    %35 = arith.mulf %3, %33 : vector<8x512xf32>
    %cst_10 = arith.constant dense<0.000000e+00> : vector<512xf32>
    %36 = vector.multi_reduction <add>, %35, %cst_10 [0] : vector<8x512xf32> to vector<512xf32>
    %37 = vector.shape_cast %36 : vector<512xf32> to vector<1x512xf32>
    %38 = arith.addf %34, %37 : vector<1x512xf32>
    %c0_11 = arith.constant 0 : index
    %c0_12 = arith.constant 0 : index
    %39 = vector.load %arg3[%c0_11, %c0_12] : memref<1x512xf32, #tpu.memory_space<vmem>>, vector<1x512xf32>
    tpu.vector_store %arg3[%c0_11, %c0_12], %38 {strides = array<i32>} : memref<1x512xf32, #tpu.memory_space<vmem>>, vector<1x512xf32>,
    %c0_i32_13 = arith.constant 0 : i32
    %40 = arith.cmpi eq, %arg0, %c0_i32_13 : i32
    %41 = arith.extui %40 : i1 to i32
    %c0_i32_14 = arith.constant 0 : i32
    %42 = arith.cmpi ne, %41, %c0_i32_14 : i32
    scf.if %42 {
      %c0_15 = arith.constant 0 : index
      %c0_16 = arith.constant 0 : index
      %43 = vector.load %arg3[%c0_15, %c0_16] : memref<1x512xf32, #tpu.memory_space<vmem>>, vector<1x512xf32>
      %cst_17 = arith.constant dense<0.000000e+00> : vector<1xf32>
      %44 = vector.multi_reduction <add>, %43, %cst_17 [1] : vector<1x512xf32> to vector<1xf32>
      %45 = vector.shape_cast %44 : vector<1xf32> to vector<1x1xf32>
      %c0_18 = arith.constant 0 : index
      %c0_19 = arith.constant 0 : index
      %46 = vector.load %arg2[%c0_18, %c0_19] : memref<1x1xf32, #tpu.memory_space<vmem>>, vector<1x1xf32>
      tpu.vector_store %arg2[%c0_18, %c0_19], %45 {strides = array<i32>} : memref<1x1xf32, #tpu.memory_space<vmem>>, vector<1x1xf32>,
    } else {
    }
    return
  }
  func.func @transform_0(%arg0: i32) -> (i32, i32) {
    %c0_i32 = arith.constant 0 : i32
    %c0_i32_0 = arith.constant 0 : i32
    return %arg0, %c0_i32 : i32, i32
  }
  func.func @transform_1(%arg0: i32) -> (i32, i32) {
    %c0_i32 = arith.constant 0 : i32
    %c0_i32_0 = arith.constant 0 : i32
    %c0_i32_1 = arith.constant 0 : i32
    return %c0_i32, %c0_i32_0 : i32, i32
  }
}

</mosaic_0001>

<llo_original>
// kernel: tpu_custom_call.1
$region0: #{tpu_custom_call.1}
  #allocation0 [shape = 'u32[]', space=smem, size = 0x4, offset = 0x4, fixed_abs, tag = 'smem constant byte address 0x4 - core index']
  #allocation1 [shape = 'u32[144,128]{1,0:T(1,128)}', space=vmem, size = 0x12000, scoped, tag = 'internal scratch']
  #allocation2 [shape = 'f32[1,512]{1,0:T(1,128)}', space=vmem, size = 0x800, scoped, tag = 'scratch operand']
  %s0 = inlined_call_operand.hbm [shape: f32[8,512], index: 0, kind: input, shape index: {}]
  %s1 = inlined_call_operand.hbm [shape: f32[1,1], index: 1, kind: output, shape index: {}]
  %s2 = sld [smem:[#allocation0]]
  $region26: #{tpu_custom_call.1} parent=0
    _
  %s4 = ssub.s32 1, %s2
  %s5 = scalar_select 0, %s4, %s2
  $region1: #{tpu_custom_call.1} parent=0
    #allocation3 [shape = 'u8[16384]{0}', space=vmem, size = 0x4000, scoped, tag = 'input window, operand 0, single buffered']
    #allocation4 [shape = 's32[1]{0}', space=sflag, size = 0x4, scoped, tag = 'scoped memory for tpu_custom_call.1']
    #allocation5 [shape = 's32[1]{0}', space=sflag, size = 0x4, scoped, tag = 'scoped memory for tpu_custom_call.1']
    #allocation6 [shape = 'u8[512]{0}', space=vmem, size = 0x400, scoped, tag = 'output window, operand 0, single buffered']
    %6 = vsyncpa [#allocation4], 0
    %7 = vsyncpa [#allocation5], 0
    // Predicated region
    $region2: #{tpu_custom_call.1} parent=1 // pred_check
      _
    $region3: #{tpu_custom_call.1} parent=1 // pred_check_branch
      %9 = sbr.rel (0) target = $region5
    $region4: #{tpu_custom_call.1} parent=1 // pred_region
      %s11 = ssub.s32 512, 512
      %12 = vsyncadd [#allocation4], %s11
      %s14 = sshll.u32 [#allocation3], 4
      %s15 = int_to_ptr.vmem [resolvable:$true] %s14
      %17 = dma.hbm_to_vmem [thread:$0]  %s0, 512, %s15, [#allocation4]
    $region5: #{tpu_custom_call.1} parent=1 // pred_fallthru
      _
    // Predicated region
    $region6: #{tpu_custom_call.1} parent=1 // pred_check
      _
    $region7: #{tpu_custom_call.1} parent=1 // pred_check_branch
      %19 = sbr.rel (0) target = $region9
    $region8: #{tpu_custom_call.1} parent=1 // pred_region
      %20 = dma.done [#allocation4], 512
    $region9: #{tpu_custom_call.1} parent=1 // pred_fallthru
      _
    %p21 = scmp.eq.s32.totalorder 0, 0
    // Predicated region
    $region10: #{tpu_custom_call.1} parent=1 // pred_check
      %p22 = pneg %p21
    $region11: #{tpu_custom_call.1} parent=1 // pred_check_branch
      %24 = sbr.rel (%p22) target = $region13
    $region12: #{tpu_custom_call.1} parent=1 // pred_region
      %vm25 = vcmask 0
      %26 = vst.msk [vmem:[#allocation6] sm:$0x1] %vm25, 0.0
      %v27 = vlaneseq
      %vm28 = vcmp.ge.s32.totalorder %v27, 0
      %vm29 = vcmp.lt.s32.totalorder %v27, 512
      %vm30 = vmand %vm28, %vm29
      %31 = vst.msk [vmem:[#allocation2] sm:$0xf] %vm30, 0.0
    $region13: #{tpu_custom_call.1} parent=1 // pred_fallthru
      _
    %v32 = vld [vmem:[#allocation3] sm:$0xff]
    %v33 = vld [vmem:[#allocation3 + $0x8] sm:$0xff]
    %v34 = vld [vmem:[#allocation3 + $0x10] sm:$0xff]
    %v35 = vld [vmem:[#allocation3 + $0x18] sm:$0xff]
    %v36 = vlaneseq
    %v37 = vshrl.u32 %v36, 7
    %s38 = smul.u32 0, 8
    %v39 = vstv %s38
    %v40 = vadd.s32 %v37, %v39
    %v41 = vlaneseq
    %v42 = vand.u32 %v41, 127
    %v43 = vadd.s32 %v42, 128
    %v44 = vadd.s32 %v42, 256
    %v45 = vadd.s32 %v42, 384
    %v46 = vmul.u32 %v40, 512
    %v47 = vadd.s32 %v46, %v42
    %v48 = vadd.s32 %v46, %v43
    %v49 = vadd.s32 %v46, %v44
    %v50 = vadd.s32 %v46, %v45
    %vm51 = vcmp.ge.s32.totalorder %v47, 0
    %vm52 = vcmp.ge.s32.totalorder %v48, 0
    %vm53 = vcmp.ge.s32.totalorder %v49, 0
    %vm54 = vcmp.ge.s32.totalorder %v50, 0
    %vm55 = vcmp.lt.s32.totalorder %v47, 10
    %vm56 = vcmp.lt.s32.totalorder %v48, 10
    %vm57 = vcmp.lt.s32.totalorder %v49, 10
    %vm58 = vcmp.lt.s32.totalorder %v50, 10
    %vm59 = vmand %vm51, %vm55
    %vm60 = vmand %vm52, %vm56
    %vm61 = vmand %vm53, %vm57
    %vm62 = vmand %vm54, %vm58
    %v63 = vsel %vm59, 0.1, 0.0
    %v64 = vsel %vm60, 0.1, 0.0
    %v65 = vsel %vm61, 0.1, 0.0
    %v66 = vsel %vm62, 0.1, 0.0
    %vm67 = vcmp.ge.s32.totalorder %v47, 10
    %vm68 = vcmp.ge.s32.totalorder %v48, 10
    %vm69 = vcmp.ge.s32.totalorder %v49, 10
    %vm70 = vcmp.ge.s32.totalorder %v50, 10
    %vm71 = vcmp.lt.s32.totalorder %v47, 16
    %vm72 = vcmp.lt.s32.totalorder %v48, 16
    %vm73 = vcmp.lt.s32.totalorder %v49, 16
    %vm74 = vcmp.lt.s32.totalorder %v50, 16
    %vm75 = vmand %vm67, %vm71
    %vm76 = vmand %vm68, %vm72
    %vm77 = vmand %vm69, %vm73
    %vm78 = vmand %vm70, %vm74
    %v79 = vsel %vm75, 0.16666667, %v63
    %v80 = vsel %vm76, 0.16666667, %v64
    %v81 = vsel %vm77, 0.16666667, %v65
    %v82 = vsel %vm78, 0.16666667, %v66
    %vm83 = vcmp.ge.s32.totalorder %v47, 16
    %vm84 = vcmp.ge.s32.totalorder %v48, 16
    %vm85 = vcmp.ge.s32.totalorder %v49, 16
    %vm86 = vcmp.ge.s32.totalorder %v50, 16
    %vm87 = vcmp.lt.s32.totalorder %v47, 17
    %vm88 = vcmp.lt.s32.totalorder %v48, 17
    %vm89 = vcmp.lt.s32.totalorder %v49, 17
    %vm90 = vcmp.lt.s32.totalorder %v50, 17
    %vm91 = vmand %vm83, %vm87
    %vm92 = vmand %vm84, %vm88
    %vm93 = vmand %vm85, %vm89
    %vm94 = vmand %vm86, %vm90
    %v95 = vsel %vm91, 1.0, %v79
    %v96 = vsel %vm92, 1.0, %v80
    %v97 = vsel %vm93, 1.0, %v81
    %v98 = vsel %vm94, 1.0, %v82
    %v99 = vld [vmem:[#allocation2] sm:$0xf]
    %v100 = vmul.f32 %v32, %v95
    %v101 = vmul.f32 %v33, %v96
    %v102 = vmul.f32 %v34, %v97
    %v103 = vmul.f32 %v35, %v98
    %v104 = vrot.slane %v100, 4
    %v105 = vadd.f32 %v100, %v104
    %v106 = vrot.slane %v105, 2
    %v107 = vadd.f32 %v105, %v106
    %v108 = vrot.slane %v107, 1
    %v109 = vadd.f32 %v107, %v108
    %v110 = vrot.slane %v101, 4
    %v111 = vadd.f32 %v101, %v110
    %v112 = vrot.slane %v111, 2
    %v113 = vadd.f32 %v111, %v112
    %v114 = vrot.slane %v113, 1
    %v115 = vadd.f32 %v113, %v114
    %v116 = vrot.slane %v102, 4
    %v117 = vadd.f32 %v102, %v116
    %v118 = vrot.slane %v117, 2
    %v119 = vadd.f32 %v117, %v118
    %v120 = vrot.slane %v119, 1
    %v121 = vadd.f32 %v119, %v120
    %v122 = vrot.slane %v103, 4
    %v123 = vadd.f32 %v103, %v122
    %v124 = vrot.slane %v123, 2
    %v125 = vadd.f32 %v123, %v124
    %v126 = vrot.slane %v125, 1
    %v127 = vadd.f32 %v125, %v126
    %v132 = vcombine.low %v109, %v115
    %v133 = vcombine.low %v121, %v127
    %v135 = vunpack.c.l.s4 1966171168
    %v136 = vunpack.c.0.s8 %v135
    %v137 = vlaneseq
    %v138 = vshrl.u32 %v137, 7
    %v139 = vsub.s32 %v136, %v138
    %v140 = vrot.slane %v132, %v139
    %v142 = vunpack.c.l.s4 1966171168
    %v143 = vunpack.c.0.s8 %v142
    %v144 = vlaneseq
    %v145 = vshrl.u32 %v144, 7
    %v146 = vsub.s32 %v143, %v145
    %v147 = vrot.slane %v133, %v146
    %v148 = vcombine.low %v140, %v147
    %v150 = vunpack.c.l.s4 1966171168
    %v151 = vunpack.c.0.s8 %v150
    %v152 = vlaneseq
    %v153 = vshrl.u32 %v152, 7
    %v154 = vsub.s32 %v151, %v153
    %v155 = vrot.slane %v148, %v154
    %v157 = vadd.f32 %v99, %v155
    %v158 = vlaneseq
    %vm159 = vcmp.ge.s32.totalorder %v158, 0
    %vm160 = vcmp.lt.s32.totalorder %v158, 512
    %vm161 = vmand %vm159, %vm160
    %162 = vst.msk [vmem:[#allocation2] sm:$0xf] %vm161, %v157
    // Predicated region
    $region14: #{tpu_custom_call.1} parent=1 // pred_check
      %p163 = pneg %p21
    $region15: #{tpu_custom_call.1} parent=1 // pred_check_branch
      %165 = sbr.rel (%p163) target = $region17
    $region16: #{tpu_custom_call.1} parent=1 // pred_region
      %v166 = vld [vmem:[#allocation2] sm:$0xf]
      %v168 = vlaneseq
      %v169 = vshrl.u32 %v168, 7
      %v170 = vsub.s32 0, %v169
      %v171 = vrot.slane %v166, %v170
      %v172 = vlaneseq
      %v173 = vshrl.u32 %v172, 7
      %v174 = vsub.s32 1, %v173
      %v175 = vrot.slane %v166, %v174
      %v176 = vlaneseq
      %v177 = vshrl.u32 %v176, 7
      %v178 = vsub.s32 2, %v177
      %v179 = vrot.slane %v166, %v178
      %v180 = vlaneseq
      %v181 = vshrl.u32 %v180, 7
      %v182 = vsub.s32 3, %v181
      %v183 = vrot.slane %v166, %v182
      %vm188 = vcmask 1040384
      %v189 = vsel %vm188, %v171, 0.0
      %v190 = vsel %vm188, %v175, 0.0
      %v191 = vadd.f32 %v189, %v190
      %v192 = vsel %vm188, %v179, 0.0
      %v193 = vadd.f32 %v191, %v192
      %v194 = vsel %vm188, %v183, 0.0
      %v195 = vadd.f32 %v193, %v194
      %196 = vadd.xlane.f32.xlu0 %v195
      %v197 = vpop.xlane.xlu0 %196
      %vm198 = vcmask 0
      %199 = vst.msk [vmem:[#allocation6] sm:$0x1] %vm198, %v197
    $region17: #{tpu_custom_call.1} parent=1 // pred_fallthru
      _
    // Predicated region
    $region18: #{tpu_custom_call.1} parent=1 // pred_check
      _
    $region19: #{tpu_custom_call.1} parent=1 // pred_check_branch
      %201 = sbr.rel (0) target = $region21
    $region20: #{tpu_custom_call.1} parent=1 // pred_region
      %s203 = ssub.s32 16, 16
      %204 = vsyncadd [#allocation5], %s203
      %s206 = sshll.u32 [#allocation6], 4
      %s207 = int_to_ptr.vmem [resolvable:$true] %s206
      %209 = dma.vmem_to_hbm [thread:$0]  %s207, 16, %s1, [#allocation5]
    $region21: #{tpu_custom_call.1} parent=1 // pred_fallthru
      _
    // Predicated region
    $region22: #{tpu_custom_call.1} parent=1 // pred_check
      _
    $region23: #{tpu_custom_call.1} parent=1 // pred_check_branch
      %211 = sbr.rel (0) target = $region25
    $region24: #{tpu_custom_call.1} parent=1 // pred_region
      %212 = dma.done [#allocation5], 16
    $region25: #{tpu_custom_call.1} parent=1 // pred_fallthru
      _
    %213 = vsyncpa [#allocation4], 1
    %214 = vsyncpa [#allocation5], 1

</llo_original>
